<compile_context>
chip_gen: v6e
topology: v6e:2x2x1
jax: 0.10.0
libtpu: 0.0.40
codegen_flags: <defaults>
</compile_context>

<pallas_src>
import functools

import jax
import jax.numpy as jnp
from jax import lax
from jax.experimental import pallas as pl
from jax.experimental.pallas import tpu as pltpu

N_STATE = 20
N_ACTION = 2
H1 = 400
H2 = 200

# lane-padded (128-multiple) hidden sizes; output padded only to 8 sublanes (transposed)
H1_PAD = 512
H2_PAD = 256
OUT_SUB = 8


def _round_up(n, m):
    return ((n + m - 1) // m) * m


def _pick_tb(b):
    """Fixed tile menu: bounds jit recompiles and padded-row waste.

    tb=256 for small/medium batches (keeps nb=2 for b in (256, 512] -> v7x megacore),
    tb=512 for large batches (nb >= 2, ~85% of HBM roofline per tile).
    """
    if b <= 8:
        return 8
    if b <= 512:
        return 256
    return 512


def _actor_mlp_kernel(x_ref, w1_ref, b1_ref, w2_ref, b2_ref, w3t_ref, b3t_ref,
                      o_ref):
    """One batch tile of the fused MLP (all f32, f32 MXU accumulation).

    Output is produced transposed: (OUT_SUB=8, tb) with batch on the lane axis,
    so the HBM store is lane-dense and only 32 B per batch row.
    """
    x = x_ref[...]                                                    # (TB, 20)
    h1 = jnp.dot(x, w1_ref[...], preferred_element_type=jnp.float32)  # (TB, 512)
    h1 = jnp.maximum(h1 + b1_ref[...], 0.0)
    h2 = jnp.dot(h1, w2_ref[...], preferred_element_type=jnp.float32)  # (TB, 256)
    h2 = jnp.maximum(h2 + b2_ref[...], 0.0)
    # (8, 256) x (TB, 256) contracting on dim 256 -> (8, TB)
    logits_t = lax.dot_general(
        w3t_ref[...], h2, (((1,), (1,)), ((), ())),
        preferred_element_type=jnp.float32)                           # (8, TB)
    o_ref[...] = jax.nn.sigmoid(logits_t + b3t_ref[...])


@functools.partial(jax.jit, static_argnames=("tb",))
def _actor_mlp(x_pad, w1, b1, w2, b2, w3t, b3t, *, tb):
    b_pad = x_pad.shape[0]
    nb = b_pad // tb

    flops = 2 * b_pad * (N_STATE * H1_PAD + H1_PAD * H2_PAD + H2_PAD * OUT_SUB)
    bytes_accessed = (
        x_pad.size * 4                                    # input
        + (w1.size + w2.size + w3t.size) * 4              # f32 weights
        + (b1.size + b2.size + b3t.size) * 4              # f32 biases
        + OUT_SUB * b_pad * 4)                            # transposed output

    return pl.pallas_call(
        _actor_mlp_kernel,
        out_shape=jax.ShapeDtypeStruct((OUT_SUB, b_pad), jnp.float32),
        grid_spec=pltpu.PrefetchScalarGridSpec(
            num_scalar_prefetch=0,
            grid=(nb,),
            in_specs=[
                pl.BlockSpec((tb, N_STATE), lambda i: (i, 0)),         # x tile
                pl.BlockSpec((N_STATE, H1_PAD), lambda i: (0, 0)),     # w1 (resident)
                pl.BlockSpec((1, H1_PAD), lambda i: (0, 0)),           # b1
                pl.BlockSpec((H1_PAD, H2_PAD), lambda i: (0, 0)),      # w2
                pl.BlockSpec((1, H2_PAD), lambda i: (0, 0)),           # b2
                pl.BlockSpec((OUT_SUB, H2_PAD), lambda i: (0, 0)),     # w3^T
                pl.BlockSpec((OUT_SUB, 1), lambda i: (0, 0)),          # b3^T
            ],
            out_specs=pl.BlockSpec((OUT_SUB, tb), lambda i: (0, i)),   # (8, tb) tile
        ),
        compiler_params=pltpu.CompilerParams(
            dimension_semantics=("parallel",)),
        cost_estimate=pl.CostEstimate(
            flops=flops,
            transcendentals=OUT_SUB * b_pad,
            bytes_accessed=bytes_accessed),
    )(x_pad, w1, b1, w2, b2, w3t, b3t)


def init_actor_params(key, n_state=N_STATE, n_action=N_ACTION):
    """Init mimicking nn.Linear (uniform(-1/sqrt(fan_in), +1/sqrt(fan_in))).

    Weights stored transposed (in, out) and zero-padded to lane-aligned sizes,
    all in float32 (matches the PyTorch f32 module).  The last layer is stored
    output-major as (OUT_SUB, H2_PAD) so the kernel can emit a (8, batch) result.
    """
    def linear(k, fan_in, fan_out):
        kw, kb = jax.random.split(k)
        bound = 1.0 / jnp.sqrt(fan_in)
        w = jax.random.uniform(kw, (fan_in, fan_out), jnp.float32, -bound, bound)
        b = jax.random.uniform(kb, (fan_out,), jnp.float32, -bound, bound)
        return w, b

    k1, k2, k3 = jax.random.split(key, 3)
    w1, b1 = linear(k1, n_state, H1)
    w2, b2 = linear(k2, H1, H2)
    w3, b3 = linear(k3, H2, n_action)

    w1_p = jnp.zeros((N_STATE, H1_PAD), jnp.float32).at[:, :H1].set(w1)
    b1_p = jnp.zeros((1, H1_PAD), jnp.float32).at[0, :H1].set(b1)
    w2_p = jnp.zeros((H1_PAD, H2_PAD), jnp.float32).at[:H1, :H2].set(w2)
    b2_p = jnp.zeros((1, H2_PAD), jnp.float32).at[0, :H2].set(b2)
    w3t_p = jnp.zeros((OUT_SUB, H2_PAD), jnp.float32).at[:n_action, :H2].set(w3.T)
    b3t_p = jnp.zeros((OUT_SUB, 1), jnp.float32).at[:n_action, 0].set(b3)
    return (w1_p, b1_p, w2_p, b2_p, w3t_p, b3t_p)


def actor_forward(params, state):
    """Matches Actor.forward semantics: dim promotion + trailing squeeze."""
    state = jnp.asarray(state, jnp.float32)
    if state.ndim != 2:
        state = state[None]
    b = state.shape[0]
    tb = _pick_tb(b)
    b_pad = _round_up(b, tb)
    if b_pad == b:
        x_pad = state
    else:
        x_pad = jnp.zeros((b_pad, N_STATE), jnp.float32).at[:b].set(state)
    out_t = _actor_mlp(x_pad, *params, tb=tb)         # (8, b_pad), batch on lanes
    return jnp.squeeze(out_t[:N_ACTION, :b].T)        # mirrors torch .squeeze()


def _reference_forward(params, state):
    """Pure-JAX f32 reference mirroring the PyTorch module."""
    w1, b1, w2, b2, w3t, b3t = params
    x = jnp.asarray(state, jnp.float32)
    if x.ndim != 2:
        x = x[None]
    hp = jax.lax.Precision.HIGHEST
    h1 = jnp.maximum(jnp.dot(x, w1, precision=hp) + b1, 0.0)
    h2 = jnp.maximum(jnp.dot(h1, w2, precision=hp) + b2, 0.0)
    y = jax.nn.sigmoid(jnp.dot(h2, w3t.T, precision=hp) + b3t.T)
    return jnp.squeeze(y[:, :N_ACTION])


if __name__ == "__main__":
    key = jax.random.PRNGKey(0)
    pkey, xkey, bkey = jax.random.split(key, 3)
    params = init_actor_params(pkey)

    # batch of 2 states, each of dim n_state=20
    state = jax.random.normal(xkey, (2, N_STATE), jnp.float32)
    out = actor_forward(params, state)
    jax.block_until_ready(out)
    assert out.shape == (2, N_ACTION), out.shape
    ref = _reference_forward(params, state)
    assert jnp.allclose(out, ref, atol=1e-4, rtol=1e-4), (out, ref)

    # 1-D input path (state.dim() != 2 branch) -> squeezed to (n_action,)
    out1 = actor_forward(params, state[0])
    jax.block_until_ready(out1)
    assert out1.shape == (N_ACTION,), out1.shape
    assert jnp.allclose(out1, ref[0], atol=1e-4, rtol=1e-4)

    # batched path exercising multiple grid steps (tb=512, nb=2: even megacore split)
    big_state = jax.random.normal(bkey, (600, N_STATE), jnp.float32)
    out_big = actor_forward(params, big_state)
    jax.block_until_ready(out_big)
    assert out_big.shape == (600, N_ACTION), out_big.shape
    ref_big = _reference_forward(params, big_state)
    assert jnp.allclose(out_big, ref_big, atol=1e-4, rtol=1e-4)

    print("KERNEL_OK")
</pallas_src>

<mosaic_0001>
module attributes {stable_mosaic.version = 11 : i64} {
  func.func @_actor_mlp_kernel(%arg0: i32, %arg1: memref<8x20xf32, #tpu.memory_space<vmem>>, %arg2: memref<20x512xf32, #tpu.memory_space<vmem>>, %arg3: memref<1x512xf32, #tpu.memory_space<vmem>>, %arg4: memref<512x256xf32, #tpu.memory_space<vmem>>, %arg5: memref<1x256xf32, #tpu.memory_space<vmem>>, %arg6: memref<8x256xf32, #tpu.memory_space<vmem>>, %arg7: memref<8x1xf32, #tpu.memory_space<vmem>>, %arg8: memref<8x8xf32, #tpu.memory_space<vmem>>) attributes {dimension_semantics = [#tpu.dimension_semantics<parallel>], iteration_bounds = array<i64: 1>, scalar_prefetch = 0 : i64, scratch_operands = 0 : i64, tpu.core_type = #tpu.core_type<tc>, window_params = [{transform_indices = @transform_0, window_bounds = array<i64: 8, 20>}, {pipeline_mode = #tpu.pipeline_mode<synchronous>, transform_indices = @transform_1, window_bounds = array<i64: 20, 512>}, {pipeline_mode = #tpu.pipeline_mode<synchronous>, transform_indices = @transform_2, window_bounds = array<i64: 1, 512>}, {pipeline_mode = #tpu.pipeline_mode<synchronous>, transform_indices = @transform_3, window_bounds = array<i64: 512, 256>}, {pipeline_mode = #tpu.pipeline_mode<synchronous>, transform_indices = @transform_4, window_bounds = array<i64: 1, 256>}, {pipeline_mode = #tpu.pipeline_mode<synchronous>, transform_indices = @transform_5, window_bounds = array<i64: 8, 256>}, {pipeline_mode = #tpu.pipeline_mode<synchronous>, transform_indices = @transform_6, window_bounds = array<i64: 8, 1>}, {transform_indices = @transform_7, window_bounds = array<i64: 8, 8>}]} {
    %c0 = arith.constant 0 : index
    %c0_0 = arith.constant 0 : index
    %0 = vector.load %arg1[%c0, %c0_0] : memref<8x20xf32, #tpu.memory_space<vmem>>, vector<8x20xf32>
    %c0_1 = arith.constant 0 : index
    %c0_2 = arith.constant 0 : index
    %1 = vector.load %arg2[%c0_1, %c0_2] : memref<20x512xf32, #tpu.memory_space<vmem>>, vector<20x512xf32>
    %cst = arith.constant dense<0.000000e+00> : vector<8x512xf32>
    %2 = tpu.matmul %0, %1, %cst {dimension_numbers = #tpu.dot_dimension_numbers<[1], [0], [0], [1], [0, 0, 1, 1], [], []>} : vector<8x20xf32>, vector<20x512xf32>, vector<8x512xf32> -> vector<8x512xf32>
    %c0_3 = arith.constant 0 : index
    %c0_4 = arith.constant 0 : index
    %3 = vector.load %arg3[%c0_3, %c0_4] : memref<1x512xf32, #tpu.memory_space<vmem>>, vector<1x512xf32>
    %4 = vector.broadcast %3 : vector<1x512xf32> to vector<8x512xf32>
    %5 = arith.addf %2, %4 : vector<8x512xf32>
    %cst_5 = arith.constant 0.000000e+00 : f32
    %6 = vector.broadcast %cst_5 : f32 to vector<8x512xf32>
    %7 = arith.maximumf %5, %6 : vector<8x512xf32>
    %c0_6 = arith.constant 0 : index
    %c0_7 = arith.constant 0 : index
    %8 = vector.load %arg4[%c0_6, %c0_7] : memref<512x256xf32, #tpu.memory_space<vmem>>, vector<512x256xf32>
    %cst_8 = arith.constant dense<0.000000e+00> : vector<8x256xf32>
    %9 = tpu.matmul %7, %8, %cst_8 {dimension_numbers = #tpu.dot_dimension_numbers<[1], [0], [0], [1], [0, 0, 1, 1], [], []>} : vector<8x512xf32>, vector<512x256xf32>, vector<8x256xf32> -> vector<8x256xf32>
    %c0_9 = arith.constant 0 : index
    %c0_10 = arith.constant 0 : index
    %10 = vector.load %arg5[%c0_9, %c0_10] : memref<1x256xf32, #tpu.memory_space<vmem>>, vector<1x256xf32>
    %11 = vector.broadcast %10 : vector<1x256xf32> to vector<8x256xf32>
    %12 = arith.addf %9, %11 : vector<8x256xf32>
    %cst_11 = arith.constant 0.000000e+00 : f32
    %13 = vector.broadcast %cst_11 : f32 to vector<8x256xf32>
    %14 = arith.maximumf %12, %13 : vector<8x256xf32>
    %c0_12 = arith.constant 0 : index
    %c0_13 = arith.constant 0 : index
    %15 = vector.load %arg6[%c0_12, %c0_13] : memref<8x256xf32, #tpu.memory_space<vmem>>, vector<8x256xf32>
    %cst_14 = arith.constant dense<0.000000e+00> : vector<8x8xf32>
    %16 = tpu.matmul %15, %14, %cst_14 {dimension_numbers = #tpu.dot_dimension_numbers<[1], [1], [0], [0], [0, 0, 1, 0], [], []>} : vector<8x256xf32>, vector<8x256xf32>, vector<8x8xf32> -> vector<8x8xf32>
    %c0_15 = arith.constant 0 : index
    %c0_16 = arith.constant 0 : index
    %17 = vector.load %arg7[%c0_15, %c0_16] : memref<8x1xf32, #tpu.memory_space<vmem>>, vector<8x1xf32>
    %18 = vector.broadcast %17 : vector<8x1xf32> to vector<8x8xf32>
    %19 = arith.addf %16, %18 : vector<8x8xf32>
    %20 = arith.negf %19 : vector<8x8xf32>
    %21 = math.exp %20 : vector<8x8xf32>
    %cst_17 = arith.constant 1.000000e+00 : f32
    %22 = vector.broadcast %cst_17 : f32 to vector<8x8xf32>
    %23 = arith.addf %22, %21 : vector<8x8xf32>
    %24 = arith.divf %22, %23 : vector<8x8xf32>
    %c0_18 = arith.constant 0 : index
    %c0_19 = arith.constant 0 : index
    %25 = vector.load %arg8[%c0_18, %c0_19] : memref<8x8xf32, #tpu.memory_space<vmem>>, vector<8x8xf32>
    tpu.vector_store %arg8[%c0_18, %c0_19], %24 {strides = array<i32>} : memref<8x8xf32, #tpu.memory_space<vmem>>, vector<8x8xf32>,
    return
  }
  func.func @transform_0(%arg0: i32) -> (i32, i32) {
    %c0_i32 = arith.constant 0 : i32
    %c0_i32_0 = arith.constant 0 : i32
    return %arg0, %c0_i32 : i32, i32
  }
  func.func @transform_1(%arg0: i32) -> (i32, i32) {
    %c0_i32 = arith.constant 0 : i32
    %c0_i32_0 = arith.constant 0 : i32
    %c0_i32_1 = arith.constant 0 : i32
    return %c0_i32, %c0_i32_0 : i32, i32
  }
  func.func @transform_2(%arg0: i32) -> (i32, i32) {
    %c0_i32 = arith.constant 0 : i32
    %c0_i32_0 = arith.constant 0 : i32
    %c0_i32_1 = arith.constant 0 : i32
    return %c0_i32, %c0_i32_0 : i32, i32
  }
  func.func @transform_3(%arg0: i32) -> (i32, i32) {
    %c0_i32 = arith.constant 0 : i32
    %c0_i32_0 = arith.constant 0 : i32
    %c0_i32_1 = arith.constant 0 : i32
    return %c0_i32, %c0_i32_0 : i32, i32
  }
  func.func @transform_4(%arg0: i32) -> (i32, i32) {
    %c0_i32 = arith.constant 0 : i32
    %c0_i32_0 = arith.constant 0 : i32
    %c0_i32_1 = arith.constant 0 : i32
    return %c0_i32, %c0_i32_0 : i32, i32
  }
  func.func @transform_5(%arg0: i32) -> (i32, i32) {
    %c0_i32 = arith.constant 0 : i32
    %c0_i32_0 = arith.constant 0 : i32
    %c0_i32_1 = arith.constant 0 : i32
    return %c0_i32, %c0_i32_0 : i32, i32
  }
  func.func @transform_6(%arg0: i32) -> (i32, i32) {
    %c0_i32 = arith.constant 0 : i32
    %c0_i32_0 = arith.constant 0 : i32
    %c0_i32_1 = arith.constant 0 : i32
    return %c0_i32, %c0_i32_0 : i32, i32
  }
  func.func @transform_7(%arg0: i32) -> (i32, i32) {
    %c0_i32 = arith.constant 0 : i32
    %c0_i32_0 = arith.constant 0 : i32
    return %c0_i32, %arg0 : i32, i32
  }
}

</mosaic_0001>

<llo_original>
// kernel: _actor_mlp.1
$region0: #{_actor_mlp.1}
  #allocation0 [shape = 'u32[]', space=smem, size = 0x4, offset = 0x4, fixed_abs, tag = 'smem constant byte address 0x4 - core index']
  #allocation1 [shape = 'u32[144,128]{1,0:T(1,128)}', space=vmem, size = 0x12000, scoped, tag = 'internal scratch']
  %s0 = inlined_call_operand.hbm [shape: f32[8,20], index: 0, kind: input, shape index: {}]
  %s1 = inlined_call_operand.hbm [shape: f32[20,512], index: 1, kind: input, shape index: {}]
  %s2 = inlined_call_operand.hbm [shape: f32[1,512], index: 2, kind: input, shape index: {}]
  %s3 = inlined_call_operand.hbm [shape: f32[512,256], index: 3, kind: input, shape index: {}]
  %s4 = inlined_call_operand.vmem [shape: f32[1,256], index: 4, kind: input, shape index: {}]
  %s5 = inlined_call_operand.vmem [shape: f32[8,256], index: 5, kind: input, shape index: {}]
  %s6 = inlined_call_operand.vmem [shape: f32[8,1], index: 6, kind: input, shape index: {}]
  %s7 = inlined_call_operand.hbm [shape: f32[8,8], index: 7, kind: output, shape index: {}]
  %s8 = sld [smem:[#allocation0]]
  $region54: #{_actor_mlp.1} parent=0
    _
  %s10 = ssub.s32 1, %s8
  %s11 = scalar_select 0, %s10, %s8
  $region1: #{_actor_mlp.1} parent=0
    #allocation2 [shape = 'u8[4096]{0}', space=vmem, size = 0x1000, scoped, tag = 'input window, operand 0, single buffered']
    #allocation3 [shape = 's32[1]{0}', space=sflag, size = 0x4, scoped, tag = 'scoped memory for _actor_mlp.1']
    #allocation4 [shape = 's32[1]{0}', space=sflag, size = 0x4, scoped, tag = 'scoped memory for _actor_mlp.1']
    #allocation5 [shape = 'u8[49152]{0}', space=vmem, size = 0xc000, scoped, tag = 'input window, operand 1, single buffered']
    #allocation6 [shape = 's32[1]{0}', space=sflag, size = 0x4, scoped, tag = 'scoped memory for _actor_mlp.1']
    #allocation7 [shape = 'u8[2048]{0}', space=vmem, size = 0x800, scoped, tag = 'input window, operand 2, single buffered']
    #allocation8 [shape = 'u8[524288]{0}', space=vmem, size = 0x80000, scoped, tag = 'input window, operand 3, single buffered']
    #allocation9 [shape = 's32[1]{0}', space=sflag, size = 0x4, scoped, tag = 'scoped memory for _actor_mlp.1']
    #allocation10 [shape = 'u8[4096]{0}', space=vmem, size = 0x1000, scoped, tag = 'output window, operand 0, single buffered']
    %12 = vsyncpa [#allocation3], 0
    %13 = vsyncpa [#allocation6], 0
    %14 = vsyncpa [#allocation9], 0
    %15 = vsyncpa [#allocation4], 0
    // Predicated region
    $region2: #{_actor_mlp.1} parent=1 // pred_check
      _
    $region3: #{_actor_mlp.1} parent=1 // pred_check_branch
      %17 = sbr.rel (0) target = $region5
    $region4: #{_actor_mlp.1} parent=1 // pred_region
      %s19 = ssub.s32 128, 128
      %20 = vsyncadd [#allocation3], %s19
      %s22 = sshll.u32 [#allocation2], 4
      %s23 = int_to_ptr.vmem [resolvable:$true] %s22
      %25 = dma.hbm_to_vmem [thread:$0]  %s0, 128, %s23, [#allocation3]
    $region5: #{_actor_mlp.1} parent=1 // pred_fallthru
      _
    // Predicated region
    $region6: #{_actor_mlp.1} parent=1 // pred_check
      _
    $region7: #{_actor_mlp.1} parent=1 // pred_check_branch
      %27 = sbr.rel (0) target = $region9
    $region8: #{_actor_mlp.1} parent=1 // pred_region
      %s29 = ssub.s32 1536, 1536
      %30 = vsyncadd [#allocation6], %s29
      %s31 = sshll.u32 [#allocation5], 4
      %s32 = int_to_ptr.vmem [resolvable:$true] %s31
      %37 = dma.hbm_to_vmem [thread:$0]  %s1, 1536, %s32, [#allocation6], 512, 512, 32
    $region9: #{_actor_mlp.1} parent=1 // pred_fallthru
      _
    // Predicated region
    $region10: #{_actor_mlp.1} parent=1 // pred_check
      _
    $region11: #{_actor_mlp.1} parent=1 // pred_check_branch
      %39 = sbr.rel (0) target = $region13
    $region12: #{_actor_mlp.1} parent=1 // pred_region
      %s41 = ssub.s32 64, 64
      %42 = vsyncadd [#allocation6], %s41
      %s44 = sshll.u32 [#allocation7], 4
      %s45 = int_to_ptr.vmem [resolvable:$true] %s44
      %47 = dma.hbm_to_vmem [thread:$0]  %s2, 64, %s45, [#allocation6]
    $region13: #{_actor_mlp.1} parent=1 // pred_fallthru
      _
    // Predicated region
    $region14: #{_actor_mlp.1} parent=1 // pred_check
      _
    $region15: #{_actor_mlp.1} parent=1 // pred_check_branch
      %49 = sbr.rel (0) target = $region17
    $region16: #{_actor_mlp.1} parent=1 // pred_region
      %s51 = ssub.s32 16384, 16384
      %52 = vsyncadd [#allocation9], %s51
      %s53 = sshll.u32 [#allocation8], 4
      %s54 = int_to_ptr.vmem [resolvable:$true] %s53
      %59 = dma.hbm_to_vmem [thread:$0]  %s3, 16384, %s54, [#allocation9], 256, 256, 16
    $region17: #{_actor_mlp.1} parent=1 // pred_fallthru
      _
    // Predicated region
    $region18: #{_actor_mlp.1} parent=1 // pred_check
      _
    $region19: #{_actor_mlp.1} parent=1 // pred_check_branch
      %61 = sbr.rel (0) target = $region21
    $region20: #{_actor_mlp.1} parent=1 // pred_region
      _
    $region21: #{_actor_mlp.1} parent=1 // pred_fallthru
      _
    // Predicated region
    $region22: #{_actor_mlp.1} parent=1 // pred_check
      _
    $region23: #{_actor_mlp.1} parent=1 // pred_check_branch
      %63 = sbr.rel (0) target = $region25
    $region24: #{_actor_mlp.1} parent=1 // pred_region
      _
    $region25: #{_actor_mlp.1} parent=1 // pred_fallthru
      _
    // Predicated region
    $region26: #{_actor_mlp.1} parent=1 // pred_check
      _
    $region27: #{_actor_mlp.1} parent=1 // pred_check_branch
      %65 = sbr.rel (0) target = $region29
    $region28: #{_actor_mlp.1} parent=1 // pred_region
      _
    $region29: #{_actor_mlp.1} parent=1 // pred_fallthru
      _
    // Predicated region
    $region30: #{_actor_mlp.1} parent=1 // pred_check
      _
    $region31: #{_actor_mlp.1} parent=1 // pred_check_branch
      %67 = sbr.rel (0) target = $region33
    $region32: #{_actor_mlp.1} parent=1 // pred_region
      %68 = dma.done [#allocation3], 128
    $region33: #{_actor_mlp.1} parent=1 // pred_fallthru
      _
    // Predicated region
    $region34: #{_actor_mlp.1} parent=1 // pred_check
      _
    $region35: #{_actor_mlp.1} parent=1 // pred_check_branch
      %70 = sbr.rel (0) target = $region37
    $region36: #{_actor_mlp.1} parent=1 // pred_region
      %71 = dma.done [#allocation6], 1536
    $region37: #{_actor_mlp.1} parent=1 // pred_fallthru
      _
    // Predicated region
    $region38: #{_actor_mlp.1} parent=1 // pred_check
      _
    $region39: #{_actor_mlp.1} parent=1 // pred_check_branch
      %73 = sbr.rel (0) target = $region41
    $region40: #{_actor_mlp.1} parent=1 // pred_region
      %74 = dma.done [#allocation6], 64
    $region41: #{_actor_mlp.1} parent=1 // pred_fallthru
      _
    // Predicated region
    $region42: #{_actor_mlp.1} parent=1 // pred_check
      _
    $region43: #{_actor_mlp.1} parent=1 // pred_check_branch
      %76 = sbr.rel (0) target = $region45
    $region44: #{_actor_mlp.1} parent=1 // pred_region
      %77 = dma.done [#allocation9], 16384
    $region45: #{_actor_mlp.1} parent=1 // pred_fallthru
      _
    %v78 = vld [vmem:[#allocation2] sm:$0xff]
    %v79 = vld [vmem:[#allocation5] sm:$0xff]
    %v80 = vld [vmem:[#allocation5 + $0x8] sm:$0xff]
    %v81 = vld [vmem:[#allocation5 + $0x10] sm:$0xff]
    %v82 = vld [vmem:[#allocation5 + $0x18] sm:$0xff]
    %v83 = vld [vmem:[#allocation5 + $0x20] sm:$0xff]
    %v84 = vld [vmem:[#allocation5 + $0x28] sm:$0xff]
    %v85 = vld [vmem:[#allocation5 + $0x30] sm:$0xff]
    %v86 = vld [vmem:[#allocation5 + $0x38] sm:$0xff]
    %v87 = vld [vmem:[#allocation5 + $0x40] sm:$0xf]
    %v88 = vld [vmem:[#allocation5 + $0x48] sm:$0xf]
    %v89 = vld [vmem:[#allocation5 + $0x50] sm:$0xf]
    %v90 = vld [vmem:[#allocation5 + $0x58] sm:$0xf]
    %v91 = vld [vmem:[#allocation7] sm:$0xf]
    %v93 = vlaneseq
    %v94 = vshrl.u32 %v93, 7
    %v95 = vsub.s32 0, %v94
    %v96 = vrot.slane %v91, %v95
    %v97 = vlaneseq
    %v98 = vshrl.u32 %v97, 7
    %v99 = vsub.s32 1, %v98
    %v100 = vrot.slane %v91, %v99
    %v101 = vlaneseq
    %v102 = vshrl.u32 %v101, 7
    %v103 = vsub.s32 2, %v102
    %v104 = vrot.slane %v91, %v103
    %v105 = vlaneseq
    %v106 = vshrl.u32 %v105, 7
    %v107 = vsub.s32 3, %v106
    %v108 = vrot.slane %v91, %v107
    %vm113 = vcmask 162816
    %v115 = vsel %vm113, %v78, 0
    %vm117 = vcmask 1043456
    %v119 = vsel %vm117, %v87, 0
    %v122 = vsel %vm117, %v88, 0
    %v125 = vsel %vm117, %v89, 0
    %v128 = vsel %vm117, %v90, 0
    %130 = vmatprep.subr.mxu0 0.0
    %131 = vmatpush1.msra.mxu0 0.0
    %132 = vmatprep.subr.mxu0 0.0
    %133 = vmatpush1.msra.mxu0 0.0
    %134 = vmatprep.subr.mxu0 0.0
    %135 = vmatpush1.msra.mxu0 0.0
    %136 = vmatprep.subr.mxu0 0.0
    %137 = vmatpush1.msra.mxu0 0.0
    %138 = vmatprep.subr.mxu0 0.0
    %139 = vmatpush1.msra.mxu0 0.0
    %140 = vmatprep.subr.mxu0 0.0
    %141 = vmatpush1.msra.mxu0 0.0
    %142 = vmatprep.subr.mxu0 0.0
    %143 = vmatpush1.msra.mxu0 0.0
    %144 = vmatprep.subr.mxu0 0.0
    %145 = vmatpush1.msra.mxu0 0.0
    %146 = vmatprep.subr.mxu0 0.0
    %147 = vmatpush1.msra.mxu0 0.0
    %148 = vmatprep.subr.mxu0 0.0
    %149 = vmatpush1.msra.mxu0 0.0
    %150 = vmatprep.subr.mxu0 0.0
    %151 = vmatpush1.msra.mxu0 0.0
    %152 = vmatprep.subr.mxu0 0.0
    %153 = vmatpush1.msra.mxu0 0.0
    %154 = vmatprep.subr.mxu0 0.0
    %155 = vmatpush1.msra.mxu0 0.0
    %156 = vmatprep.subr.mxu0 %v122
    %157 = vmatpush1.msra.mxu0 %v119
    %158 = vmatprep.subr.mxu0 %v84
    %159 = vmatpush1.msra.mxu0 %v83
    %160 = vmatprep.subr.mxu0 %v80
    %161 = vmatpush1.msra.mxu0 %v79
    %162 = vmatprep.subr.mxu0 0.0
    %163 = vmatpush2.msra.mxu0 0.0
    %164 = vmatprep.subr.mxu0 0.0
    %165 = vmatpush2.msra.mxu0 0.0
    %166 = vmatprep.subr.mxu0 0.0
    %167 = vmatpush2.msra.mxu0 0.0
    %168 = vmatprep.subr.mxu0 0.0
    %169 = vmatpush2.msra.mxu0 0.0
    %170 = vmatprep.subr.mxu0 0.0
    %171 = vmatpush2.msra.mxu0 0.0
    %172 = vmatprep.subr.mxu0 0.0
    %173 = vmatpush2.msra.mxu0 0.0
    %174 = vmatprep.subr.mxu0 0.0
    %175 = vmatpush2.msra.mxu0 0.0
    %176 = vmatprep.subr.mxu0 0.0
    %177 = vmatpush2.msra.mxu0 0.0
    %178 = vmatprep.subr.mxu0 0.0
    %179 = vmatpush2.msra.mxu0 0.0
    %180 = vmatprep.subr.mxu0 0.0
    %181 = vmatpush2.msra.mxu0 0.0
    %182 = vmatprep.subr.mxu0 0.0
    %183 = vmatpush2.msra.mxu0 0.0
    %184 = vmatprep.subr.mxu0 0.0
    %185 = vmatpush2.msra.mxu0 0.0
    %186 = vmatprep.subr.mxu0 0.0
    %187 = vmatpush2.msra.mxu0 0.0
    %188 = vmatprep.subr.mxu0 0.0
    %189 = vmatpush2.msra.mxu0 0.0
    %190 = vmatprep.subr.mxu0 0.0
    %191 = vmatpush2.msra.mxu0 0.0
    %192 = vmatprep.subr.mxu0 0.0
    %193 = vmatpush2.msra.mxu0 0.0
    %194 = vmatprep.mubr.f32.mxu0 0.0
    %195 = vmatmul.mubr.f32.gmra.mxu0 %v115
    %v196 = vpop.f32.mrf.mxu0
    %v197 = vadd.f32 %v96, %v196
    %v198 = vpop.f32.mrf.mxu0
    %v199 = vadd.f32 %v100, %v198
    %200 = vdwg.mxu0
    %201 = vmatprep.subr.mxu0 0.0
    %202 = vmatpush1.msra.mxu0 0.0
    %203 = vmatprep.subr.mxu0 0.0
    %204 = vmatpush1.msra.mxu0 0.0
    %205 = vmatprep.subr.mxu0 0.0
    %206 = vmatpush1.msra.mxu0 0.0
    %207 = vmatprep.subr.mxu0 0.0
    %208 = vmatpush1.msra.mxu0 0.0
    %209 = vmatprep.subr.mxu0 0.0
    %210 = vmatpush1.msra.mxu0 0.0
    %211 = vmatprep.subr.mxu0 0.0
    %212 = vmatpush1.msra.mxu0 0.0
    %213 = vmatprep.subr.mxu0 0.0
    %214 = vmatpush1.msra.mxu0 0.0
    %215 = vmatprep.subr.mxu0 0.0
    %216 = vmatpush1.msra.mxu0 0.0
    %217 = vmatprep.subr.mxu0 0.0
    %218 = vmatpush1.msra.mxu0 0.0
    %219 = vmatprep.subr.mxu0 0.0
    %220 = vmatpush1.msra.mxu0 0.0
    %221 = vmatprep.subr.mxu0 0.0
    %222 = vmatpush1.msra.mxu0 0.0
    %223 = vmatprep.subr.mxu0 0.0
    %224 = vmatpush1.msra.mxu0 0.0
    %225 = vmatprep.subr.mxu0 0.0
    %226 = vmatpush1.msra.mxu0 0.0
    %227 = vmatprep.subr.mxu0 %v128
    %228 = vmatpush1.msra.mxu0 %v125
    %229 = vmatprep.subr.mxu0 %v86
    %230 = vmatpush1.msra.mxu0 %v85
    %231 = vmatprep.subr.mxu0 %v82
    %232 = vmatpush1.msra.mxu0 %v81
    %233 = vmatprep.subr.mxu0 0.0
    %234 = vmatpush2.msra.mxu0 0.0
    %235 = vmatprep.subr.mxu0 0.0
    %236 = vmatpush2.msra.mxu0 0.0
    %237 = vmatprep.subr.mxu0 0.0
    %238 = vmatpush2.msra.mxu0 0.0
    %239 = vmatprep.subr.mxu0 0.0
    %240 = vmatpush2.msra.mxu0 0.0
    %241 = vmatprep.subr.mxu0 0.0
    %242 = vmatpush2.msra.mxu0 0.0
    %243 = vmatprep.subr.mxu0 0.0
    %244 = vmatpush2.msra.mxu0 0.0
    %245 = vmatprep.subr.mxu0 0.0
    %246 = vmatpush2.msra.mxu0 0.0
    %247 = vmatprep.subr.mxu0 0.0
    %248 = vmatpush2.msra.mxu0 0.0
    %249 = vmatprep.subr.mxu0 0.0
    %250 = vmatpush2.msra.mxu0 0.0
    %251 = vmatprep.subr.mxu0 0.0
    %252 = vmatpush2.msra.mxu0 0.0
    %253 = vmatprep.subr.mxu0 0.0
    %254 = vmatpush2.msra.mxu0 0.0
    %255 = vmatprep.subr.mxu0 0.0
    %256 = vmatpush2.msra.mxu0 0.0
    %257 = vmatprep.subr.mxu0 0.0
    %258 = vmatpush2.msra.mxu0 0.0
    %259 = vmatprep.subr.mxu0 0.0
    %260 = vmatpush2.msra.mxu0 0.0
    %261 = vmatprep.subr.mxu0 0.0
    %262 = vmatpush2.msra.mxu0 0.0
    %263 = vmatprep.subr.mxu0 0.0
    %264 = vmatpush2.msra.mxu0 0.0
    %265 = vmatprep.mubr.f32.mxu0 0.0
    %266 = vmatmul.mubr.f32.gmra.mxu0 %v115
    %v267 = vpop.f32.mrf.mxu0
    %v268 = vadd.f32 %v104, %v267
    %v269 = vpop.f32.mrf.mxu0
    %v270 = vadd.f32 %v108, %v269
    %271 = vdwg.mxu0
    %v272 = vmax.f32 %v197, 0.0
    %v273 = vmax.f32 %v199, 0.0
    %v274 = vmax.f32 %v268, 0.0
    %v275 = vmax.f32 %v270, 0.0
    %v276 = vld [vmem:[#allocation8] sm:$0xff]
    %v277 = vld [vmem:[#allocation8 + $0x8] sm:$0xff]
    %v278 = vld [vmem:[#allocation8 + $0x10] sm:$0xff]
    %v279 = vld [vmem:[#allocation8 + $0x18] sm:$0xff]
    %v280 = vld [vmem:[#allocation8 + $0x20] sm:$0xff]
    %v281 = vld [vmem:[#allocation8 + $0x28] sm:$0xff]
    %v282 = vld [vmem:[#allocation8 + $0x30] sm:$0xff]
    %v283 = vld [vmem:[#allocation8 + $0x38] sm:$0xff]
    %v284 = vld [vmem:[#allocation8 + $0x40] sm:$0xff]
    %v285 = vld [vmem:[#allocation8 + $0x48] sm:$0xff]
    %v286 = vld [vmem:[#allocation8 + $0x50] sm:$0xff]
    %v287 = vld [vmem:[#allocation8 + $0x58] sm:$0xff]
    %v288 = vld [vmem:[#allocation8 + $0x60] sm:$0xff]
    %v289 = vld [vmem:[#allocation8 + $0x68] sm:$0xff]
    %v290 = vld [vmem:[#allocation8 + $0x70] sm:$0xff]
    %v291 = vld [vmem:[#allocation8 + $0x78] sm:$0xff]
    %v292 = vld [vmem:[#allocation8 + $0x80] sm:$0xff]
    %v293 = vld [vmem:[#allocation8 + $0x88] sm:$0xff]
    %v294 = vld [vmem:[#allocation8 + $0x90] sm:$0xff]
    %v295 = vld [vmem:[#allocation8 + $0x98] sm:$0xff]
    %v296 = vld [vmem:[#allocation8 + $0xa0] sm:$0xff]
    %v297 = vld [vmem:[#allocation8 + $0xa8] sm:$0xff]
    %v298 = vld [vmem:[#allocation8 + $0xb0] sm:$0xff]
    %v299 = vld [vmem:[#allocation8 + $0xb8] sm:$0xff]
    %v300 = vld [vmem:[#allocation8 + $0xc0] sm:$0xff]
    %v301 = vld [vmem:[#allocation8 + $0xc8] sm:$0xff]
    %v302 = vld [vmem:[#allocation8 + $0xd0] sm:$0xff]
    %v303 = vld [vmem:[#allocation8 + $0xd8] sm:$0xff]
    %v304 = vld [vmem:[#allocation8 + $0xe0] sm:$0xff]
    %v305 = vld [vmem:[#allocation8 + $0xe8] sm:$0xff]
    %v306 = vld [vmem:[#allocation8 + $0xf0] sm:$0xff]
    %v307 = vld [vmem:[#allocation8 + $0xf8] sm:$0xff]
    %v308 = vld [vmem:[#allocation8 + $0x100] sm:$0xff]
    %v309 = vld [vmem:[#allocation8 + $0x108] sm:$0xff]
    %v310 = vld [vmem:[#allocation8 + $0x110] sm:$0xff]
    %v311 = vld [vmem:[#allocation8 + $0x118] sm:$0xff]
    %v312 = vld [vmem:[#allocation8 + $0x120] sm:$0xff]
    %v313 = vld [vmem:[#allocation8 + $0x128] sm:$0xff]
    %v314 = vld [vmem:[#allocation8 + $0x130] sm:$0xff]
    %v315 = vld [vmem:[#allocation8 + $0x138] sm:$0xff]
    %v316 = vld [vmem:[#allocation8 + $0x140] sm:$0xff]
    %v317 = vld [vmem:[#allocation8 + $0x148] sm:$0xff]
    %v318 = vld [vmem:[#allocation8 + $0x150] sm:$0xff]
    %v319 = vld [vmem:[#allocation8 + $0x158] sm:$0xff]
    %v320 = vld [vmem:[#allocation8 + $0x160] sm:$0xff]
    %v321 = vld [vmem:[#allocation8 + $0x168] sm:$0xff]
    %v322 = vld [vmem:[#allocation8 + $0x170] sm:$0xff]
    %v323 = vld [vmem:[#allocation8 + $0x178] sm:$0xff]
    %v324 = vld [vmem:[#allocation8 + $0x180] sm:$0xff]
    %v325 = vld [vmem:[#allocation8 + $0x188] sm:$0xff]
    %v326 = vld [vmem:[#allocation8 + $0x190] sm:$0xff]
    %v327 = vld [vmem:[#allocation8 + $0x198] sm:$0xff]
    %v328 = vld [vmem:[#allocation8 + $0x1a0] sm:$0xff]
    %v329 = vld [vmem:[#allocation8 + $0x1a8] sm:$0xff]
    %v330 = vld [vmem:[#allocation8 + $0x1b0] sm:$0xff]
    %v331 = vld [vmem:[#allocation8 + $0x1b8] sm:$0xff]
    %v332 = vld [vmem:[#allocation8 + $0x1c0] sm:$0xff]
    %v333 = vld [vmem:[#allocation8 + $0x1c8] sm:$0xff]
    %v334 = vld [vmem:[#allocation8 + $0x1d0] sm:$0xff]
    %v335 = vld [vmem:[#allocation8 + $0x1d8] sm:$0xff]
    %v336 = vld [vmem:[#allocation8 + $0x1e0] sm:$0xff]
    %v337 = vld [vmem:[#allocation8 + $0x1e8] sm:$0xff]
    %v338 = vld [vmem:[#allocation8 + $0x1f0] sm:$0xff]
    %v339 = vld [vmem:[#allocation8 + $0x1f8] sm:$0xff]
    %v340 = vld [vmem:[#allocation8 + $0x200] sm:$0xff]
    %v341 = vld [vmem:[#allocation8 + $0x208] sm:$0xff]
    %v342 = vld [vmem:[#allocation8 + $0x210] sm:$0xff]
    %v343 = vld [vmem:[#allocation8 + $0x218] sm:$0xff]
    %v344 = vld [vmem:[#allocation8 + $0x220] sm:$0xff]
    %v345 = vld [vmem:[#allocation8 + $0x228] sm:$0xff]
    %v346 = vld [vmem:[#allocation8 + $0x230] sm:$0xff]
    %v347 = vld [vmem:[#allocation8 + $0x238] sm:$0xff]
    %v348 = vld [vmem:[#allocation8 + $0x240] sm:$0xff]
    %v349 = vld [vmem:[#allocation8 + $0x248] sm:$0xff]
    %v350 = vld [vmem:[#allocation8 + $0x250] sm:$0xff]
    %v351 = vld [vmem:[#allocation8 + $0x258] sm:$0xff]
    %v352 = vld [vmem:[#allocation8 + $0x260] sm:$0xff]
    %v353 = vld [vmem:[#allocation8 + $0x268] sm:$0xff]
    %v354 = vld [vmem:[#allocation8 + $0x270] sm:$0xff]
    %v355 = vld [vmem:[#allocation8 + $0x278] sm:$0xff]
    %v356 = vld [vmem:[#allocation8 + $0x280] sm:$0xff]
    %v357 = vld [vmem:[#allocation8 + $0x288] sm:$0xff]
    %v358 = vld [vmem:[#allocation8 + $0x290] sm:$0xff]
    %v359 = vld [vmem:[#allocation8 + $0x298] sm:$0xff]
    %v360 = vld [vmem:[#allocation8 + $0x2a0] sm:$0xff]
    %v361 = vld [vmem:[#allocation8 + $0x2a8] sm:$0xff]
    %v362 = vld [vmem:[#allocation8 + $0x2b0] sm:$0xff]
    %v363 = vld [vmem:[#allocation8 + $0x2b8] sm:$0xff]
    %v364 = vld [vmem:[#allocation8 + $0x2c0] sm:$0xff]
    %v365 = vld [vmem:[#allocation8 + $0x2c8] sm:$0xff]
    %v366 = vld [vmem:[#allocation8 + $0x2d0] sm:$0xff]
    %v367 = vld [vmem:[#allocation8 + $0x2d8] sm:$0xff]
    %v368 = vld [vmem:[#allocation8 + $0x2e0] sm:$0xff]
    %v369 = vld [vmem:[#allocation8 + $0x2e8] sm:$0xff]
    %v370 = vld [vmem:[#allocation8 + $0x2f0] sm:$0xff]
    %v371 = vld [vmem:[#allocation8 + $0x2f8] sm:$0xff]
    %v372 = vld [vmem:[#allocation8 + $0x300] sm:$0xff]
    %v373 = vld [vmem:[#allocation8 + $0x308] sm:$0xff]
    %v374 = vld [vmem:[#allocation8 + $0x310] sm:$0xff]
    %v375 = vld [vmem:[#allocation8 + $0x318] sm:$0xff]
    %v376 = vld [vmem:[#allocation8 + $0x320] sm:$0xff]
    %v377 = vld [vmem:[#allocation8 + $0x328] sm:$0xff]
    %v378 = vld [vmem:[#allocation8 + $0x330] sm:$0xff]
    %v379 = vld [vmem:[#allocation8 + $0x338] sm:$0xff]
    %v380 = vld [vmem:[#allocation8 + $0x340] sm:$0xff]
    %v381 = vld [vmem:[#allocation8 + $0x348] sm:$0xff]
    %v382 = vld [vmem:[#allocation8 + $0x350] sm:$0xff]
    %v383 = vld [vmem:[#allocation8 + $0x358] sm:$0xff]
    %v384 = vld [vmem:[#allocation8 + $0x360] sm:$0xff]
    %v385 = vld [vmem:[#allocation8 + $0x368] sm:$0xff]
    %v386 = vld [vmem:[#allocation8 + $0x370] sm:$0xff]
    %v387 = vld [vmem:[#allocation8 + $0x378] sm:$0xff]
    %v388 = vld [vmem:[#allocation8 + $0x380] sm:$0xff]
    %v389 = vld [vmem:[#allocation8 + $0x388] sm:$0xff]
    %v390 = vld [vmem:[#allocation8 + $0x390] sm:$0xff]
    %v391 = vld [vmem:[#allocation8 + $0x398] sm:$0xff]
    %v392 = vld [vmem:[#allocation8 + $0x3a0] sm:$0xff]
    %v393 = vld [vmem:[#allocation8 + $0x3a8] sm:$0xff]
    %v394 = vld [vmem:[#allocation8 + $0x3b0] sm:$0xff]
    %v395 = vld [vmem:[#allocation8 + $0x3b8] sm:$0xff]
    %v396 = vld [vmem:[#allocation8 + $0x3c0] sm:$0xff]
    %v397 = vld [vmem:[#allocation8 + $0x3c8] sm:$0xff]
    %v398 = vld [vmem:[#allocation8 + $0x3d0] sm:$0xff]
    %v399 = vld [vmem:[#allocation8 + $0x3d8] sm:$0xff]
    %v400 = vld [vmem:[#allocation8 + $0x3e0] sm:$0xff]
    %v401 = vld [vmem:[#allocation8 + $0x3e8] sm:$0xff]
    %v402 = vld [vmem:[#allocation8 + $0x3f0] sm:$0xff]
    %v403 = vld [vmem:[#allocation8 + $0x3f8] sm:$0xff]
    %v404 = vld [vmem:[%s4] sm:$0x3]
    %v406 = vlaneseq
    %v407 = vshrl.u32 %v406, 7
    %v408 = vsub.s32 0, %v407
    %v409 = vrot.slane %v404, %v408
    %v410 = vlaneseq
    %v411 = vshrl.u32 %v410, 7
    %v412 = vsub.s32 1, %v411
    %v413 = vrot.slane %v404, %v412
    %416 = vmatprep.subr.mxu0 %v307
    %417 = vmatpush1.msra.mxu0 %v306
    %418 = vmatprep.subr.mxu0 %v305
    %419 = vmatpush1.msra.mxu0 %v304
    %420 = vmatprep.subr.mxu0 %v303
    %421 = vmatpush1.msra.mxu0 %v302
    %422 = vmatprep.subr.mxu0 %v301
    %423 = vmatpush1.msra.mxu0 %v300
    %424 = vmatprep.subr.mxu0 %v299
    %425 = vmatpush1.msra.mxu0 %v298
    %426 = vmatprep.subr.mxu0 %v297
    %427 = vmatpush1.msra.mxu0 %v296
    %428 = vmatprep.subr.mxu0 %v295
    %429 = vmatpush1.msra.mxu0 %v294
    %430 = vmatprep.subr.mxu0 %v293
    %431 = vmatpush1.msra.mxu0 %v292
    %432 = vmatprep.subr.mxu0 %v291
    %433 = vmatpush1.msra.mxu0 %v290
    %434 = vmatprep.subr.mxu0 %v289
    %435 = vmatpush1.msra.mxu0 %v288
    %436 = vmatprep.subr.mxu0 %v287
    %437 = vmatpush1.msra.mxu0 %v286
    %438 = vmatprep.subr.mxu0 %v285
    %439 = vmatpush1.msra.mxu0 %v284
    %440 = vmatprep.subr.mxu0 %v283
    %441 = vmatpush1.msra.mxu0 %v282
    %442 = vmatprep.subr.mxu0 %v281
    %443 = vmatpush1.msra.mxu0 %v280
    %444 = vmatprep.subr.mxu0 %v279
    %445 = vmatpush1.msra.mxu0 %v278
    %446 = vmatprep.subr.mxu0 %v277
    %447 = vmatpush1.msra.mxu0 %v276
    %448 = vmatprep.subr.mxu0 %v339
    %449 = vmatpush2.msra.mxu0 %v338
    %450 = vmatprep.subr.mxu0 %v337
    %451 = vmatpush2.msra.mxu0 %v336
    %452 = vmatprep.subr.mxu0 %v335
    %453 = vmatpush2.msra.mxu0 %v334
    %454 = vmatprep.subr.mxu0 %v333
    %455 = vmatpush2.msra.mxu0 %v332
    %456 = vmatprep.subr.mxu0 %v331
    %457 = vmatpush2.msra.mxu0 %v330
    %458 = vmatprep.subr.mxu0 %v329
    %459 = vmatpush2.msra.mxu0 %v328
    %460 = vmatprep.subr.mxu0 %v327
    %461 = vmatpush2.msra.mxu0 %v326
    %462 = vmatprep.subr.mxu0 %v325
    %463 = vmatpush2.msra.mxu0 %v324
    %464 = vmatprep.subr.mxu0 %v323
    %465 = vmatpush2.msra.mxu0 %v322
    %466 = vmatprep.subr.mxu0 %v321
    %467 = vmatpush2.msra.mxu0 %v320
    %468 = vmatprep.subr.mxu0 %v319
    %469 = vmatpush2.msra.mxu0 %v318
    %470 = vmatprep.subr.mxu0 %v317
    %471 = vmatpush2.msra.mxu0 %v316
    %472 = vmatprep.subr.mxu0 %v315
    %473 = vmatpush2.msra.mxu0 %v314
    %474 = vmatprep.subr.mxu0 %v313
    %475 = vmatpush2.msra.mxu0 %v312
    %476 = vmatprep.subr.mxu0 %v311
    %477 = vmatpush2.msra.mxu0 %v310
    %478 = vmatprep.subr.mxu0 %v309
    %479 = vmatpush2.msra.mxu0 %v308
    %480 = vmatprep.mubr.f32.mxu0 %v273
    %481 = vmatmul.mubr.f32.gmra.mxu0 %v272
    %v482 = vpop.f32.mrf.mxu0
    %v483 = vadd.f32 %v409, %v482
    %v484 = vpop.f32.mrf.mxu0
    %v485 = vadd.f32 %v413, %v484
    %486 = vdwg.mxu0
    %487 = vmatprep.subr.mxu0 %v371
    %488 = vmatpush1.msra.mxu0 %v370
    %489 = vmatprep.subr.mxu0 %v369
    %490 = vmatpush1.msra.mxu0 %v368
    %491 = vmatprep.subr.mxu0 %v367
    %492 = vmatpush1.msra.mxu0 %v366
    %493 = vmatprep.subr.mxu0 %v365
    %494 = vmatpush1.msra.mxu0 %v364
    %495 = vmatprep.subr.mxu0 %v363
    %496 = vmatpush1.msra.mxu0 %v362
    %497 = vmatprep.subr.mxu0 %v361
    %498 = vmatpush1.msra.mxu0 %v360
    %499 = vmatprep.subr.mxu0 %v359
    %500 = vmatpush1.msra.mxu0 %v358
    %501 = vmatprep.subr.mxu0 %v357
    %502 = vmatpush1.msra.mxu0 %v356
    %503 = vmatprep.subr.mxu0 %v355
    %504 = vmatpush1.msra.mxu0 %v354
    %505 = vmatprep.subr.mxu0 %v353
    %506 = vmatpush1.msra.mxu0 %v352
    %507 = vmatprep.subr.mxu0 %v351
    %508 = vmatpush1.msra.mxu0 %v350
    %509 = vmatprep.subr.mxu0 %v349
    %510 = vmatpush1.msra.mxu0 %v348
    %511 = vmatprep.subr.mxu0 %v347
    %512 = vmatpush1.msra.mxu0 %v346
    %513 = vmatprep.subr.mxu0 %v345
    %514 = vmatpush1.msra.mxu0 %v344
    %515 = vmatprep.subr.mxu0 %v343
    %516 = vmatpush1.msra.mxu0 %v342
    %517 = vmatprep.subr.mxu0 %v341
    %518 = vmatpush1.msra.mxu0 %v340
    %519 = vmatprep.subr.mxu0 %v403
    %520 = vmatpush2.msra.mxu0 %v402
    %521 = vmatprep.subr.mxu0 %v401
    %522 = vmatpush2.msra.mxu0 %v400
    %523 = vmatprep.subr.mxu0 %v399
    %524 = vmatpush2.msra.mxu0 %v398
    %525 = vmatprep.subr.mxu0 %v397
    %526 = vmatpush2.msra.mxu0 %v396
    %527 = vmatprep.subr.mxu0 %v395
    %528 = vmatpush2.msra.mxu0 %v394
    %529 = vmatprep.subr.mxu0 %v393
    %530 = vmatpush2.msra.mxu0 %v392
    %531 = vmatprep.subr.mxu0 %v391
    %532 = vmatpush2.msra.mxu0 %v390
    %533 = vmatprep.subr.mxu0 %v389
    %534 = vmatpush2.msra.mxu0 %v388
    %535 = vmatprep.subr.mxu0 %v387
    %536 = vmatpush2.msra.mxu0 %v386
    %537 = vmatprep.subr.mxu0 %v385
    %538 = vmatpush2.msra.mxu0 %v384
    %539 = vmatprep.subr.mxu0 %v383
    %540 = vmatpush2.msra.mxu0 %v382
    %541 = vmatprep.subr.mxu0 %v381
    %542 = vmatpush2.msra.mxu0 %v380
    %543 = vmatprep.subr.mxu0 %v379
    %544 = vmatpush2.msra.mxu0 %v378
    %545 = vmatprep.subr.mxu0 %v377
    %546 = vmatpush2.msra.mxu0 %v376
    %547 = vmatprep.subr.mxu0 %v375
    %548 = vmatpush2.msra.mxu0 %v374
    %549 = vmatprep.subr.mxu0 %v373
    %550 = vmatpush2.msra.mxu0 %v372
    %551 = vmatprep.mubr.f32.mxu0 %v275
    %552 = vmatmul.mubr.f32.gmra.mxu0 %v274
    %v553 = vpop.f32.mrf.mxu0
    %v554 = vadd.f32 %v483, %v553
    %v555 = vpop.f32.mrf.mxu0
    %v556 = vadd.f32 %v485, %v555
    %557 = vdwg.mxu0
    %v558 = vmax.f32 %v554, 0.0
    %v559 = vmax.f32 %v556, 0.0
    %v560 = vld [vmem:[%s5] sm:$0xff]
    %v561 = vld [vmem:[%s5 + $0x8] sm:$0xff]
    %v562 = vld [vmem:[%s6] sm:$0xff]
    %564 = vset.pattern.permute.xlu0 0
    %565 = vperm.xlu0 %564, %v562
    %v566 = vpop.permute.xlu0 %565
    %568 = vmatprep.subr.mxu0 0.0
    %569 = vmatpush1.xpose.msra.mxu0 0.0
    %570 = vmatprep.subr.mxu0 0.0
    %571 = vmatpush1.xpose.msra.mxu0 0.0
    %572 = vmatprep.subr.mxu0 0.0
    %573 = vmatpush1.xpose.msra.mxu0 0.0
    %574 = vmatprep.subr.mxu0 0.0
    %575 = vmatpush1.xpose.msra.mxu0 0.0
    %576 = vmatprep.subr.mxu0 0.0
    %577 = vmatpush1.xpose.msra.mxu0 0.0
    %578 = vmatprep.subr.mxu0 0.0
    %579 = vmatpush1.xpose.msra.mxu0 0.0
    %580 = vmatprep.subr.mxu0 0.0
    %581 = vmatpush1.xpose.msra.mxu0 0.0
    %582 = vmatprep.subr.mxu0 0.0
    %583 = vmatpush1.xpose.msra.mxu0 0.0
    %584 = vmatprep.subr.mxu0 0.0
    %585 = vmatpush1.xpose.msra.mxu0 0.0
    %586 = vmatprep.subr.mxu0 0.0
    %587 = vmatpush1.xpose.msra.mxu0 0.0
    %588 = vmatprep.subr.mxu0 0.0
    %589 = vmatpush1.xpose.msra.mxu0 0.0
    %590 = vmatprep.subr.mxu0 0.0
    %591 = vmatpush1.xpose.msra.mxu0 0.0
    %592 = vmatprep.subr.mxu0 0.0
    %593 = vmatpush1.xpose.msra.mxu0 0.0
    %594 = vmatprep.subr.mxu0 0.0
    %595 = vmatpush1.xpose.msra.mxu0 0.0
    %596 = vmatprep.subr.mxu0 0.0
    %597 = vmatpush1.xpose.msra.mxu0 0.0
    %598 = vmatprep.subr.mxu0 %v559
    %599 = vmatpush1.xpose.msra.mxu0 %v558
    %600 = vmatprep.subr.mxu0 0.0
    %601 = vmatpush2.xpose.msra.mxu0 0.0
    %602 = vmatprep.subr.mxu0 0.0
    %603 = vmatpush2.xpose.msra.mxu0 0.0
    %604 = vmatprep.subr.mxu0 0.0
    %605 = vmatpush2.xpose.msra.mxu0 0.0
    %606 = vmatprep.subr.mxu0 0.0
    %607 = vmatpush2.xpose.msra.mxu0 0.0
    %608 = vmatprep.subr.mxu0 0.0
    %609 = vmatpush2.xpose.msra.mxu0 0.0
    %610 = vmatprep.subr.mxu0 0.0
    %611 = vmatpush2.xpose.msra.mxu0 0.0
    %612 = vmatprep.subr.mxu0 0.0
    %613 = vmatpush2.xpose.msra.mxu0 0.0
    %614 = vmatprep.subr.mxu0 0.0
    %615 = vmatpush2.xpose.msra.mxu0 0.0
    %616 = vmatprep.subr.mxu0 0.0
    %617 = vmatpush2.xpose.msra.mxu0 0.0
    %618 = vmatprep.subr.mxu0 0.0
    %619 = vmatpush2.xpose.msra.mxu0 0.0
    %620 = vmatprep.subr.mxu0 0.0
    %621 = vmatpush2.xpose.msra.mxu0 0.0
    %622 = vmatprep.subr.mxu0 0.0
    %623 = vmatpush2.xpose.msra.mxu0 0.0
    %624 = vmatprep.subr.mxu0 0.0
    %625 = vmatpush2.xpose.msra.mxu0 0.0
    %626 = vmatprep.subr.mxu0 0.0
    %627 = vmatpush2.xpose.msra.mxu0 0.0
    %628 = vmatprep.subr.mxu0 0.0
    %629 = vmatpush2.xpose.msra.mxu0 0.0
    %630 = vmatprep.subr.mxu0 0.0
    %631 = vmatpush2.xpose.msra.mxu0 0.0
    %632 = vmatprep.mubr.f32.mxu0 %v561
    %633 = vmatmul.mubr.f32.gmra.mxu0 %v560
    %v634 = vpop.f32.mrf.mxu0
    %v635 = vadd.f32 %v566, %v634
    %v636 = vpop.f32.mrf.mxu0
    %637 = vdwg.mxu0
    %v638 = vxor.u32 %v635, 2147483648
    %v639 = vmul.f32 %v638, 1.442695
    %v640 = vpow.pop %v639
    %v641 = vadd.f32 %v640, 1.0
    %v642 = vrcp.pop %v641
    %v643 = vmul.f32 1.0, %v642
    %vm644 = vcmask 64512
    %645 = vst.msk [vmem:[#allocation10] sm:$0xff] %vm644, %v643
    // Predicated region
    $region46: #{_actor_mlp.1} parent=1 // pred_check
      _
    $region47: #{_actor_mlp.1} parent=1 // pred_check_branch
      %647 = sbr.rel (0) target = $region49
    $region48: #{_actor_mlp.1} parent=1 // pred_region
      %s649 = ssub.s32 128, 128
      %650 = vsyncadd [#allocation4], %s649
      %s652 = sshll.u32 [#allocation10], 4
      %s653 = int_to_ptr.vmem [resolvable:$true] %s652
      %655 = dma.vmem_to_hbm [thread:$0]  %s653, 128, %s7, [#allocation4]
    $region49: #{_actor_mlp.1} parent=1 // pred_fallthru
      _
    // Predicated region
    $region50: #{_actor_mlp.1} parent=1 // pred_check
      _
    $region51: #{_actor_mlp.1} parent=1 // pred_check_branch
      %657 = sbr.rel (0) target = $region53
    $region52: #{_actor_mlp.1} parent=1 // pred_region
      %658 = dma.done [#allocation4], 128
    $region53: #{_actor_mlp.1} parent=1 // pred_fallthru
      _
    %659 = vsyncpa [#allocation3], 1
    %660 = vsyncpa [#allocation6], 1
    %661 = vsyncpa [#allocation9], 1
    %662 = vsyncpa [#allocation4], 1

</llo_original>
